<compile_context>
chip_gen: v6e
topology: v6e:2x2x1
jax: 0.10.0
libtpu: 0.0.40
codegen_flags: <defaults>
</compile_context>

<pallas_src>
import functools

import jax
import jax.numpy as jnp
from jax import lax
from jax.experimental import pallas as pl
from jax.experimental.pallas import tpu as pltpu

F32 = jnp.float32


# ---------------------------------------------------------------------------
# Fused kernel: one grid step covers NB batch elements, everything in VMEM.
# ---------------------------------------------------------------------------
def _fused_block_kernel(xq_ref, dw1_ref, wp1s_ref, w2_ref, b_ref,
                        out_ref, y1s_ref, *, NB, Ho, Wo, Cin, Cout):
    WCi = Wo * Cin           # lane width of stage-1 / maxpool operands
    WCo = Wo * Cout          # lane width of activations and the output
    M = NB * Ho              # fused (batch, row) dimension
    NEG = float(jnp.finfo(jnp.float32).min)   # acts as -inf (compare-only)

    dw1 = dw1_ref[...]       # (3, 3, WCi)  depthwise-1 weights, W-tiled (loaded once)
    b_all = b_ref[...]       # (3, WCo)     [b1, b_skip, b2], W-tiled

    # ---- stage-1 depthwise 3x3 / s2 taps, shared with the 3x3 / s2 maxpool --
    # xq[n, 2p+q, a, b*Cin+c] = xpad[n, 2a+p, 2b+q, c]  (zero-padded input)
    tshape = (NB, Ho, WCi)
    row0 = lax.broadcasted_iota(jnp.int32, tshape, 1) == 0      # output h == 0
    col0 = lax.broadcasted_iota(jnp.int32, tshape, 2) < Cin     # output w == 0
    acc1 = None
    mx = None
    for dy in range(3):
        for dx in range(3):
            pq = 2 * (dy % 2) + (dx % 2)
            lo = (dx // 2) * Cin
            tap = xq_ref[:, pq, dy // 2:dy // 2 + Ho, lo:lo + WCi]  # (NB,Ho,WCi)
            term = tap * dw1[dy, dx]
            acc1 = term if acc1 is None else acc1 + term
            # maxpool shares the tap; only dy==0 / dx==0 taps touch the zero
            # pad, which must act as -inf for the max.
            mtap = tap
            if dy == 0:
                mtap = jnp.where(row0, NEG, mtap)
            if dx == 0:
                mtap = jnp.where(col0, NEG, mtap)
            mx = mtap if mx is None else jnp.maximum(mx, mtap)

    # ---- stage-1 pointwise + skip pointwise: ONE fused MXU call -------------
    # Both pointwise convs are block-diagonal (kron) matmuls in the lane-fused
    # layout; operands stacked along rows, weights stacked along output lanes.
    A = jnp.concatenate([acc1.reshape(M, WCi), mx.reshape(M, WCi)], axis=0)
    R = jnp.dot(A, wp1s_ref[...], preferred_element_type=F32)      # (2M, 2*WCo)
    y1 = jnp.maximum(R[:M, :WCo] + b_all[0], 0.0)   # stage-1 activation (M, WCo)
    ys = R[M:, WCo:] + b_all[1]                     # skip branch        (M, WCo)

    # ---- stage-2: depthwise 3x3/s1 + pointwise + BN as 3 banded matmuls -----
    # The dx shifts, per-channel depthwise weights, pointwise 1x1 and folded BN
    # all live in w2_ref[dy] (WCo, WCo); only the +-1 row (dy) shifts need data
    # movement, realized with one bounce through a small VMEM scratch.  The
    # scratch is never zero-filled: every garbage / cross-batch row is masked
    # here before it is used.
    y1s_ref[1:M + 1, :] = y1
    h = lax.broadcasted_iota(jnp.int32, (M, WCo), 0) % Ho
    y_up = jnp.where(h == 0, 0.0, y1s_ref[0:M, :])            # row h-1 (top -> 0)
    y_dn = jnp.where(h == Ho - 1, 0.0, y1s_ref[2:M + 2, :])   # row h+1 (bot -> 0)

    z = jnp.dot(y_up, w2_ref[0], preferred_element_type=F32)
    z = z + jnp.dot(y1, w2_ref[1], preferred_element_type=F32)
    z = z + jnp.dot(y_dn, w2_ref[2], preferred_element_type=F32)
    y2 = jnp.maximum(z + b_all[2], 0.0)

    # Lane-dense store: last dim is Wo*Cout = 64 lanes.
    out_ref[...] = (y2 + ys).reshape(NB, Ho, WCo)


# ---------------------------------------------------------------------------
# Wrapper
# ---------------------------------------------------------------------------
def cnn_block123(x, params, *, batch_block=None):
    """x: (N, H, W, Cin) float32 NHWC.  Returns (N, H//2, W//2, Cout) NHWC."""
    N, H, W, Cin = x.shape
    assert H % 2 == 0 and W % 2 == 0, "stride-2 parity split assumes even H, W"
    Cout = params["pw1_w"].shape[1]
    Ho, Wo = H // 2, W // 2
    WCi, WCo = Wo * Cin, Wo * Cout

    NB = N if batch_block is None else batch_block
    assert N % NB == 0
    # NOTE(v7x): for larger N pick NB = cdiv(N, 2) so both TensorCores get work.

    # ---- trace-time folding: BN + depthwise biases into the pointwise -------
    Wp1 = (params["pw1_w"] * params["bn1_scale"][None, :]).astype(F32)
    b1 = (params["pw1_b"] + params["dw1_b"] @ params["pw1_w"]) \
        * params["bn1_scale"] + params["bn1_shift"]
    Wp2 = (params["pw2_w"] * params["bn2_scale"][None, :]).astype(F32)
    b2 = (params["pw2_b"] + params["dw2_b"] @ params["pw2_w"]) \
        * params["bn2_scale"] + params["bn2_shift"]
    Wps = (params["dws_w"][:, None] * params["pws_w"]).astype(F32)  # 1x1 dw folded
    bs = params["pws_b"] + params["dws_b"] @ params["pws_w"]

    # Pointwise convs as block-diagonal matmuls in the lane-fused (W*C) layout,
    # stage-1 and skip stacked along the output lanes (one MXU call in-kernel).
    eyeW = jnp.eye(Wo, dtype=F32)
    wp1s = jnp.concatenate([jnp.kron(eyeW, Wp1),
                            jnp.kron(eyeW, Wps)], axis=1)        # (WCi, 2*WCo)

    # Stage-2: fold dx taps + depthwise weights + pointwise + BN into one
    # banded (WCo, WCo) matrix per dy row shift.
    dw2 = params["dw2_w"].astype(F32)                            # (3, 3, Cout)
    w2band = jnp.stack([
        sum(jnp.kron(jnp.eye(Wo, k=1 - dx, dtype=F32),
                     dw2[dy, dx][:, None] * Wp2)
            for dx in range(3))
        for dy in range(3)])                                     # (3, WCo, WCo)

    b_stack = jnp.stack([jnp.tile(b1, Wo), jnp.tile(bs, Wo),
                         jnp.tile(b2, Wo)]).astype(F32)          # (3, WCo)
    dw1_t = jnp.tile(params["dw1_w"].astype(F32), (1, 1, Wo))    # (3, 3, WCi)

    # ---- single zero-padded, parity-split, lane-fused copy of the input -----
    # xq[n, 2p+q, a, b*Cin+c] = xpad[n, 2a+p, 2b+q, c]
    xpad = jnp.pad(x.astype(F32), ((0, 0), (1, 1), (1, 1), (0, 0)))
    xq = (xpad.reshape(N, Ho + 1, 2, Wo + 1, 2, Cin)
              .transpose(0, 2, 4, 1, 3, 5)
              .reshape(N, 4, Ho + 1, (Wo + 1) * Cin))

    cost = pl.CostEstimate(
        flops=int(2 * (2 * N * Ho) * WCi * (2 * WCo)      # fused stage-1 + skip
                  + 3 * 2 * (N * Ho) * WCo * WCo          # stage-2 banded matmuls
                  + 27 * N * Ho * WCi),                   # stage-1 tap VPU work
        transcendentals=0,
        bytes_accessed=int(4 * (xq.size + N * Ho * WCo + wp1s.size
                                + w2band.size + dw1_t.size + b_stack.size)),
    )

    kernel = functools.partial(_fused_block_kernel,
                               NB=NB, Ho=Ho, Wo=Wo, Cin=Cin, Cout=Cout)
    out = pl.pallas_call(
        kernel,
        out_shape=jax.ShapeDtypeStruct((N, Ho, WCo), F32),
        grid=(N // NB,),
        in_specs=[
            pl.BlockSpec((NB, 4, Ho + 1, (Wo + 1) * Cin),
                         lambda n: (n, 0, 0, 0)),
            pl.BlockSpec((3, 3, WCi), lambda n: (0, 0, 0)),
            pl.BlockSpec((WCi, 2 * WCo), lambda n: (0, 0)),
            pl.BlockSpec((3, WCo, WCo), lambda n: (0, 0, 0)),
            pl.BlockSpec((3, WCo), lambda n: (0, 0)),
        ],
        out_specs=pl.BlockSpec((NB, Ho, WCo), lambda n: (n, 0, 0)),
        scratch_shapes=[pltpu.VMEM((NB * Ho + 2, WCo), F32)],
        compiler_params=pltpu.CompilerParams(
            dimension_semantics=("parallel",)),
        cost_estimate=cost,
    )(xq, dw1_t, wp1s, w2band, b_stack)

    # lane-dense (N, Ho, Wo*Cout) -> NHWC; contiguous reshape, free in XLA.
    return out.reshape(N, Ho, Wo, Cout)


# ---------------------------------------------------------------------------
# Deterministic parameter init (shapes follow the PyTorch module's __init__)
# ---------------------------------------------------------------------------
def init_params(key, Cin, Cout):
    ks = jax.random.split(key, 24)
    nrm = lambda k, s: (0.3 * jax.random.normal(k, s)).astype(F32)

    def bn_fold(kg, kb, km, kv, C, eps=1e-5):
        gamma = 1.0 + 0.1 * jax.random.normal(kg, (C,))
        beta = 0.1 * jax.random.normal(kb, (C,))
        mean = 0.1 * jax.random.normal(km, (C,))
        var = jnp.abs(jax.random.normal(kv, (C,))) + 0.5
        scale = gamma / jnp.sqrt(var + eps)
        shift = beta - mean * scale
        return scale.astype(F32), shift.astype(F32)

    p = {}
    # stage[0]: DWSep(Cin -> Cout, k3, s2, p1)
    p["dw1_w"], p["dw1_b"] = nrm(ks[0], (3, 3, Cin)), nrm(ks[1], (Cin,))
    p["pw1_w"], p["pw1_b"] = nrm(ks[2], (Cin, Cout)), nrm(ks[3], (Cout,))
    p["bn1_scale"], p["bn1_shift"] = bn_fold(ks[4], ks[5], ks[6], ks[7], Cout)
    # stage[3]: DWSep(Cout -> Cout, k3, s1, p1)
    p["dw2_w"], p["dw2_b"] = nrm(ks[8], (3, 3, Cout)), nrm(ks[9], (Cout,))
    p["pw2_w"], p["pw2_b"] = nrm(ks[10], (Cout, Cout)), nrm(ks[11], (Cout,))
    p["bn2_scale"], p["bn2_shift"] = bn_fold(ks[12], ks[13], ks[14], ks[15], Cout)
    # conv1x1: DWSep(Cin -> Cout, k1) -- depthwise k1 is a per-channel affine
    p["dws_w"], p["dws_b"] = nrm(ks[16], (Cin,)), nrm(ks[17], (Cin,))
    p["pws_w"], p["pws_b"] = nrm(ks[18], (Cin, Cout)), nrm(ks[19], (Cout,))
    return p


# ---------------------------------------------------------------------------
# Pure-JAX reference (for correctness check)
# ---------------------------------------------------------------------------
def ref_forward(x, p):
    def dwsep3(z, dww, dwb, pww, pwb, stride):
        C = z.shape[-1]
        y = lax.conv_general_dilated(
            z, dww.reshape(3, 3, 1, C), (stride, stride), ((1, 1), (1, 1)),
            dimension_numbers=("NHWC", "HWIO", "NHWC"), feature_group_count=C)
        y = y + dwb
        return jnp.einsum("nhwc,co->nhwo", y, pww) + pwb

    s = dwsep3(x, p["dw1_w"], p["dw1_b"], p["pw1_w"], p["pw1_b"], 2)
    s = jnp.maximum(s * p["bn1_scale"] + p["bn1_shift"], 0.0)
    s = dwsep3(s, p["dw2_w"], p["dw2_b"], p["pw2_w"], p["pw2_b"], 1)
    s = jnp.maximum(s * p["bn2_scale"] + p["bn2_shift"], 0.0)

    m = lax.reduce_window(x, -jnp.inf, lax.max, (1, 3, 3, 1), (1, 2, 2, 1),
                          ((0, 0), (1, 1), (1, 1), (0, 0)))
    m = m * p["dws_w"] + p["dws_b"]
    m = jnp.einsum("nhwc,co->nhwo", m, p["pws_w"]) + p["pws_b"]
    return s + m


# ---------------------------------------------------------------------------
if __name__ == "__main__":
    key = jax.random.PRNGKey(0)
    k_x, k_p = jax.random.split(key)

    N, Cin, H, W = 2, 4, 16, 16     # PyTorch NCHW input shape (2, 4, 16, 16)
    Cout = 8

    x_nchw = jax.random.normal(k_x, (N, Cin, H, W), F32)
    params = init_params(k_p, Cin, Cout)

    x_nhwc = jnp.transpose(x_nchw, (0, 2, 3, 1))        # NCHW -> NHWC

    fwd = jax.jit(cnn_block123)
    out_nhwc = jax.block_until_ready(fwd(x_nhwc, params))
    out_nchw = jnp.transpose(out_nhwc, (0, 3, 1, 2))    # back to PyTorch layout

    assert out_nchw.shape == (N, Cout, H // 2, W // 2), out_nchw.shape

    ref = ref_forward(x_nhwc, params)
    err = float(jnp.max(jnp.abs(out_nhwc - ref)))
    assert jnp.allclose(out_nhwc, ref, atol=2e-4, rtol=2e-4), f"max err {err}"

    print("KERNEL_OK")
</pallas_src>

<mosaic_0001>
module attributes {stable_mosaic.version = 11 : i64} {
  func.func @_fused_block_kernel(%arg0: i32, %arg1: memref<2x4x9x36xf32, #tpu.memory_space<vmem>>, %arg2: memref<3x3x32xf32, #tpu.memory_space<vmem>>, %arg3: memref<32x128xf32, #tpu.memory_space<vmem>>, %arg4: memref<3x64x64xf32, #tpu.memory_space<vmem>>, %arg5: memref<3x64xf32, #tpu.memory_space<vmem>>, %arg6: memref<2x8x64xf32, #tpu.memory_space<vmem>>, %arg7: memref<18x64xf32, #tpu.memory_space<vmem>>) attributes {dimension_semantics = [#tpu.dimension_semantics<parallel>], iteration_bounds = array<i64: 1>, scalar_prefetch = 0 : i64, scratch_operands = 1 : i64, tpu.core_type = #tpu.core_type<tc>, window_params = [{transform_indices = @transform_0, window_bounds = array<i64: 2, 4, 9, 36>}, {pipeline_mode = #tpu.pipeline_mode<synchronous>, transform_indices = @transform_1, window_bounds = array<i64: 3, 3, 32>}, {pipeline_mode = #tpu.pipeline_mode<synchronous>, transform_indices = @transform_2, window_bounds = array<i64: 32, 128>}, {pipeline_mode = #tpu.pipeline_mode<synchronous>, transform_indices = @transform_3, window_bounds = array<i64: 3, 64, 64>}, {pipeline_mode = #tpu.pipeline_mode<synchronous>, transform_indices = @transform_4, window_bounds = array<i64: 3, 64>}, {transform_indices = @transform_5, window_bounds = array<i64: 2, 8, 64>}]} {
    %c0 = arith.constant 0 : index
    %c0_0 = arith.constant 0 : index
    %c0_1 = arith.constant 0 : index
    %0 = vector.load %arg2[%c0, %c0_0, %c0_1] : memref<3x3x32xf32, #tpu.memory_space<vmem>>, vector<3x3x32xf32>
    %c0_2 = arith.constant 0 : index
    %c0_3 = arith.constant 0 : index
    %1 = vector.load %arg5[%c0_2, %c0_3] : memref<3x64xf32, #tpu.memory_space<vmem>>, vector<3x64xf32>
    %2 = tpu.iota {dimensions = array<i32: 1>} : vector<2x8x32xi32>
    %c0_i32 = arith.constant 0 : i32
    %3 = vector.broadcast %c0_i32 : i32 to vector<2x8x32xi32>
    %4 = arith.cmpi eq, %2, %3 : vector<2x8x32xi32>
    %5 = tpu.iota {dimensions = array<i32: 2>} : vector<2x8x32xi32>
    %c4_i32 = arith.constant 4 : i32
    %6 = vector.broadcast %c4_i32 : i32 to vector<2x8x32xi32>
    %7 = arith.cmpi slt, %5, %6 : vector<2x8x32xi32>
    %c0_4 = arith.constant 0 : index
    %c0_5 = arith.constant 0 : index
    %c0_6 = arith.constant 0 : index
    %c0_7 = arith.constant 0 : index
    %8 = vector.load %arg1[%c0_4, %c0_5, %c0_6, %c0_7] : memref<2x4x9x36xf32, #tpu.memory_space<vmem>>, vector<2x1x8x32xf32>
    %9 = vector.shape_cast %8 : vector<2x1x8x32xf32> to vector<2x8x32xf32>
    %10 = vector.extract_strided_slice %0 {offsets = [0, 0, 0], sizes = [1, 1, 32], strides = [1, 1, 1]} : vector<3x3x32xf32> to vector<1x1x32xf32>
    %11 = vector.shape_cast %10 : vector<1x1x32xf32> to vector<32xf32>
    %12 = vector.shape_cast %11 : vector<32xf32> to vector<1x1x32xf32>
    %13 = vector.broadcast %12 : vector<1x1x32xf32> to vector<2x8x32xf32>
    %14 = arith.mulf %9, %13 : vector<2x8x32xf32>
    %cst = arith.constant -3.40282347E+38 : f32
    %15 = vector.broadcast %cst : f32 to vector<2x8x32xf32>
    %16 = arith.select %4, %15, %9 : vector<2x8x32xi1>, vector<2x8x32xf32>
    %cst_8 = arith.constant -3.40282347E+38 : f32
    %17 = vector.broadcast %cst_8 : f32 to vector<2x8x32xf32>
    %18 = arith.select %7, %17, %16 : vector<2x8x32xi1>, vector<2x8x32xf32>
    %c0_9 = arith.constant 0 : index
    %c1 = arith.constant 1 : index
    %c0_10 = arith.constant 0 : index
    %c0_11 = arith.constant 0 : index
    %19 = vector.load %arg1[%c0_9, %c1, %c0_10, %c0_11] : memref<2x4x9x36xf32, #tpu.memory_space<vmem>>, vector<2x1x8x32xf32>
    %20 = vector.shape_cast %19 : vector<2x1x8x32xf32> to vector<2x8x32xf32>
    %21 = vector.extract_strided_slice %0 {offsets = [0, 1, 0], sizes = [1, 1, 32], strides = [1, 1, 1]} : vector<3x3x32xf32> to vector<1x1x32xf32>
    %22 = vector.shape_cast %21 : vector<1x1x32xf32> to vector<32xf32>
    %23 = vector.shape_cast %22 : vector<32xf32> to vector<1x1x32xf32>
    %24 = vector.broadcast %23 : vector<1x1x32xf32> to vector<2x8x32xf32>
    %25 = arith.mulf %20, %24 : vector<2x8x32xf32>
    %26 = arith.addf %14, %25 : vector<2x8x32xf32>
    %cst_12 = arith.constant -3.40282347E+38 : f32
    %27 = vector.broadcast %cst_12 : f32 to vector<2x8x32xf32>
    %28 = arith.select %4, %27, %20 : vector<2x8x32xi1>, vector<2x8x32xf32>
    %29 = arith.maximumf %18, %28 : vector<2x8x32xf32>
    %c0_13 = arith.constant 0 : index
    %c0_14 = arith.constant 0 : index
    %c0_15 = arith.constant 0 : index
    %c4 = arith.constant 4 : index
    %30 = vector.load %arg1[%c0_13, %c0_14, %c0_15, %c4] : memref<2x4x9x36xf32, #tpu.memory_space<vmem>>, vector<2x1x8x32xf32>
    %31 = vector.shape_cast %30 : vector<2x1x8x32xf32> to vector<2x8x32xf32>
    %32 = vector.extract_strided_slice %0 {offsets = [0, 2, 0], sizes = [1, 1, 32], strides = [1, 1, 1]} : vector<3x3x32xf32> to vector<1x1x32xf32>
    %33 = vector.shape_cast %32 : vector<1x1x32xf32> to vector<32xf32>
    %34 = vector.shape_cast %33 : vector<32xf32> to vector<1x1x32xf32>
    %35 = vector.broadcast %34 : vector<1x1x32xf32> to vector<2x8x32xf32>
    %36 = arith.mulf %31, %35 : vector<2x8x32xf32>
    %37 = arith.addf %26, %36 : vector<2x8x32xf32>
    %cst_16 = arith.constant -3.40282347E+38 : f32
    %38 = vector.broadcast %cst_16 : f32 to vector<2x8x32xf32>
    %39 = arith.select %4, %38, %31 : vector<2x8x32xi1>, vector<2x8x32xf32>
    %40 = arith.maximumf %29, %39 : vector<2x8x32xf32>
    %c0_17 = arith.constant 0 : index
    %c2 = arith.constant 2 : index
    %c0_18 = arith.constant 0 : index
    %c0_19 = arith.constant 0 : index
    %41 = vector.load %arg1[%c0_17, %c2, %c0_18, %c0_19] : memref<2x4x9x36xf32, #tpu.memory_space<vmem>>, vector<2x1x8x32xf32>
    %42 = vector.shape_cast %41 : vector<2x1x8x32xf32> to vector<2x8x32xf32>
    %43 = vector.extract_strided_slice %0 {offsets = [1, 0, 0], sizes = [1, 1, 32], strides = [1, 1, 1]} : vector<3x3x32xf32> to vector<1x1x32xf32>
    %44 = vector.shape_cast %43 : vector<1x1x32xf32> to vector<32xf32>
    %45 = vector.shape_cast %44 : vector<32xf32> to vector<1x1x32xf32>
    %46 = vector.broadcast %45 : vector<1x1x32xf32> to vector<2x8x32xf32>
    %47 = arith.mulf %42, %46 : vector<2x8x32xf32>
    %48 = arith.addf %37, %47 : vector<2x8x32xf32>
    %cst_20 = arith.constant -3.40282347E+38 : f32
    %49 = vector.broadcast %cst_20 : f32 to vector<2x8x32xf32>
    %50 = arith.select %7, %49, %42 : vector<2x8x32xi1>, vector<2x8x32xf32>
    %51 = arith.maximumf %40, %50 : vector<2x8x32xf32>
    %c0_21 = arith.constant 0 : index
    %c3 = arith.constant 3 : index
    %c0_22 = arith.constant 0 : index
    %c0_23 = arith.constant 0 : index
    %52 = vector.load %arg1[%c0_21, %c3, %c0_22, %c0_23] : memref<2x4x9x36xf32, #tpu.memory_space<vmem>>, vector<2x1x8x32xf32>
    %53 = vector.shape_cast %52 : vector<2x1x8x32xf32> to vector<2x8x32xf32>
    %54 = vector.extract_strided_slice %0 {offsets = [1, 1, 0], sizes = [1, 1, 32], strides = [1, 1, 1]} : vector<3x3x32xf32> to vector<1x1x32xf32>
    %55 = vector.shape_cast %54 : vector<1x1x32xf32> to vector<32xf32>
    %56 = vector.shape_cast %55 : vector<32xf32> to vector<1x1x32xf32>
    %57 = vector.broadcast %56 : vector<1x1x32xf32> to vector<2x8x32xf32>
    %58 = arith.mulf %53, %57 : vector<2x8x32xf32>
    %59 = arith.addf %48, %58 : vector<2x8x32xf32>
    %60 = arith.maximumf %51, %53 : vector<2x8x32xf32>
    %c0_24 = arith.constant 0 : index
    %c2_25 = arith.constant 2 : index
    %c0_26 = arith.constant 0 : index
    %c4_27 = arith.constant 4 : index
    %61 = vector.load %arg1[%c0_24, %c2_25, %c0_26, %c4_27] : memref<2x4x9x36xf32, #tpu.memory_space<vmem>>, vector<2x1x8x32xf32>
    %62 = vector.shape_cast %61 : vector<2x1x8x32xf32> to vector<2x8x32xf32>
    %63 = vector.extract_strided_slice %0 {offsets = [1, 2, 0], sizes = [1, 1, 32], strides = [1, 1, 1]} : vector<3x3x32xf32> to vector<1x1x32xf32>
    %64 = vector.shape_cast %63 : vector<1x1x32xf32> to vector<32xf32>
    %65 = vector.shape_cast %64 : vector<32xf32> to vector<1x1x32xf32>
    %66 = vector.broadcast %65 : vector<1x1x32xf32> to vector<2x8x32xf32>
    %67 = arith.mulf %62, %66 : vector<2x8x32xf32>
    %68 = arith.addf %59, %67 : vector<2x8x32xf32>
    %69 = arith.maximumf %60, %62 : vector<2x8x32xf32>
    %c0_28 = arith.constant 0 : index
    %c0_29 = arith.constant 0 : index
    %c1_30 = arith.constant 1 : index
    %c0_31 = arith.constant 0 : index
    %70 = vector.load %arg1[%c0_28, %c0_29, %c1_30, %c0_31] : memref<2x4x9x36xf32, #tpu.memory_space<vmem>>, vector<2x1x8x32xf32>
    %71 = vector.shape_cast %70 : vector<2x1x8x32xf32> to vector<2x8x32xf32>
    %72 = vector.extract_strided_slice %0 {offsets = [2, 0, 0], sizes = [1, 1, 32], strides = [1, 1, 1]} : vector<3x3x32xf32> to vector<1x1x32xf32>
    %73 = vector.shape_cast %72 : vector<1x1x32xf32> to vector<32xf32>
    %74 = vector.shape_cast %73 : vector<32xf32> to vector<1x1x32xf32>
    %75 = vector.broadcast %74 : vector<1x1x32xf32> to vector<2x8x32xf32>
    %76 = arith.mulf %71, %75 : vector<2x8x32xf32>
    %77 = arith.addf %68, %76 : vector<2x8x32xf32>
    %cst_32 = arith.constant -3.40282347E+38 : f32
    %78 = vector.broadcast %cst_32 : f32 to vector<2x8x32xf32>
    %79 = arith.select %7, %78, %71 : vector<2x8x32xi1>, vector<2x8x32xf32>
    %80 = arith.maximumf %69, %79 : vector<2x8x32xf32>
    %c0_33 = arith.constant 0 : index
    %c1_34 = arith.constant 1 : index
    %c1_35 = arith.constant 1 : index
    %c0_36 = arith.constant 0 : index
    %81 = vector.load %arg1[%c0_33, %c1_34, %c1_35, %c0_36] : memref<2x4x9x36xf32, #tpu.memory_space<vmem>>, vector<2x1x8x32xf32>
    %82 = vector.shape_cast %81 : vector<2x1x8x32xf32> to vector<2x8x32xf32>
    %83 = vector.extract_strided_slice %0 {offsets = [2, 1, 0], sizes = [1, 1, 32], strides = [1, 1, 1]} : vector<3x3x32xf32> to vector<1x1x32xf32>
    %84 = vector.shape_cast %83 : vector<1x1x32xf32> to vector<32xf32>
    %85 = vector.shape_cast %84 : vector<32xf32> to vector<1x1x32xf32>
    %86 = vector.broadcast %85 : vector<1x1x32xf32> to vector<2x8x32xf32>
    %87 = arith.mulf %82, %86 : vector<2x8x32xf32>
    %88 = arith.addf %77, %87 : vector<2x8x32xf32>
    %89 = arith.maximumf %80, %82 : vector<2x8x32xf32>
    %c0_37 = arith.constant 0 : index
    %c0_38 = arith.constant 0 : index
    %c1_39 = arith.constant 1 : index
    %c4_40 = arith.constant 4 : index
    %90 = vector.load %arg1[%c0_37, %c0_38, %c1_39, %c4_40] : memref<2x4x9x36xf32, #tpu.memory_space<vmem>>, vector<2x1x8x32xf32>
    %91 = vector.shape_cast %90 : vector<2x1x8x32xf32> to vector<2x8x32xf32>
    %92 = vector.extract_strided_slice %0 {offsets = [2, 2, 0], sizes = [1, 1, 32], strides = [1, 1, 1]} : vector<3x3x32xf32> to vector<1x1x32xf32>
    %93 = vector.shape_cast %92 : vector<1x1x32xf32> to vector<32xf32>
    %94 = vector.shape_cast %93 : vector<32xf32> to vector<1x1x32xf32>
    %95 = vector.broadcast %94 : vector<1x1x32xf32> to vector<2x8x32xf32>
    %96 = arith.mulf %91, %95 : vector<2x8x32xf32>
    %97 = arith.addf %88, %96 : vector<2x8x32xf32>
    %98 = arith.maximumf %89, %91 : vector<2x8x32xf32>
    %99 = vector.shape_cast %97 : vector<2x8x32xf32> to vector<16x32xf32>
    %100 = vector.shape_cast %98 : vector<2x8x32xf32> to vector<16x32xf32>
    %101 = tpu.concatenate %99, %100 in 0 : vector<16x32xf32>, vector<16x32xf32> -> vector<32x32xf32>
    %c0_41 = arith.constant 0 : index
    %c0_42 = arith.constant 0 : index
    %102 = vector.load %arg3[%c0_41, %c0_42] : memref<32x128xf32, #tpu.memory_space<vmem>>, vector<32x128xf32>
    %cst_43 = arith.constant dense<0.000000e+00> : vector<32x128xf32>
    %103 = tpu.matmul %101, %102, %cst_43 {dimension_numbers = #tpu.dot_dimension_numbers<[1], [0], [0], [1], [0, 0, 1, 1], [], []>} : vector<32x32xf32>, vector<32x128xf32>, vector<32x128xf32> -> vector<32x128xf32>
    %104 = vector.extract_strided_slice %103 {offsets = [0, 0], sizes = [16, 64], strides = [1, 1]} : vector<32x128xf32> to vector<16x64xf32>
    %105 = vector.extract_strided_slice %1 {offsets = [0, 0], sizes = [1, 64], strides = [1, 1]} : vector<3x64xf32> to vector<1x64xf32>
    %106 = vector.shape_cast %105 : vector<1x64xf32> to vector<64xf32>
    %107 = vector.shape_cast %106 : vector<64xf32> to vector<1x64xf32>
    %108 = vector.broadcast %107 : vector<1x64xf32> to vector<16x64xf32>
    %109 = arith.addf %104, %108 : vector<16x64xf32>
    %cst_44 = arith.constant 0.000000e+00 : f32
    %110 = vector.broadcast %cst_44 : f32 to vector<16x64xf32>
    %111 = arith.maximumf %109, %110 : vector<16x64xf32>
    %112 = vector.extract_strided_slice %103 {offsets = [16, 64], sizes = [16, 64], strides = [1, 1]} : vector<32x128xf32> to vector<16x64xf32>
    %113 = vector.extract_strided_slice %1 {offsets = [1, 0], sizes = [1, 64], strides = [1, 1]} : vector<3x64xf32> to vector<1x64xf32>
    %114 = vector.shape_cast %113 : vector<1x64xf32> to vector<64xf32>
    %115 = vector.shape_cast %114 : vector<64xf32> to vector<1x64xf32>
    %116 = vector.broadcast %115 : vector<1x64xf32> to vector<16x64xf32>
    %117 = arith.addf %112, %116 : vector<16x64xf32>
    %c1_45 = arith.constant 1 : index
    %c0_46 = arith.constant 0 : index
    %118 = vector.load %arg7[%c1_45, %c0_46] : memref<18x64xf32, #tpu.memory_space<vmem>>, vector<16x64xf32>
    tpu.vector_store %arg7[%c1_45, %c0_46], %111 {strides = array<i32>} : memref<18x64xf32, #tpu.memory_space<vmem>>, vector<16x64xf32>,
    %119 = tpu.iota {dimensions = array<i32: 0>} : vector<16x64xi32>
    %c8_i32 = arith.constant 8 : i32
    %c0_i32_47 = arith.constant 0 : i32
    %120 = arith.cmpi eq, %c8_i32, %c0_i32_47 : i32
    %c1_i32 = arith.constant 1 : i32
    %121 = arith.select %120, %c1_i32, %c8_i32 : i32
    %122 = vector.broadcast %121 : i32 to vector<16x64xi32>
    %123 = arith.remsi %119, %122 : vector<16x64xi32>
    %c0_i32_48 = arith.constant 0 : i32
    %124 = vector.broadcast %c0_i32_48 : i32 to vector<16x64xi32>
    %125 = arith.cmpi ne, %123, %124 : vector<16x64xi32>
    %c0_i32_49 = arith.constant 0 : i32
    %126 = vector.broadcast %c0_i32_49 : i32 to vector<16x64xi32>
    %127 = arith.cmpi slt, %123, %126 : vector<16x64xi32>
    %c0_i32_50 = arith.constant 0 : i32
    %128 = arith.cmpi slt, %121, %c0_i32_50 : i32
    %129 = vector.broadcast %128 : i1 to vector<16x64xi1>
    %130 = vector.broadcast %129 : vector<16x64xi1> to vector<16x64xi1>
    %131 = arith.xori %127, %130 : vector<16x64xi1>
    %132 = arith.andi %131, %125 : vector<16x64xi1>
    %133 = vector.broadcast %121 : i32 to vector<16x64xi32>
    %134 = arith.addi %123, %133 : vector<16x64xi32>
    %135 = arith.select %132, %134, %123 : vector<16x64xi1>, vector<16x64xi32>
    %c0_i32_51 = arith.constant 0 : i32
    %136 = vector.broadcast %c0_i32_51 : i32 to vector<16x64xi32>
    %137 = arith.cmpi eq, %135, %136 : vector<16x64xi32>
    %c0_52 = arith.constant 0 : index
    %c0_53 = arith.constant 0 : index
    %138 = vector.load %arg7[%c0_52, %c0_53] : memref<18x64xf32, #tpu.memory_space<vmem>>, vector<16x64xf32>
    %cst_54 = arith.constant 0.000000e+00 : f32
    %139 = vector.broadcast %cst_54 : f32 to vector<16x64xf32>
    %140 = arith.select %137, %139, %138 : vector<16x64xi1>, vector<16x64xf32>
    %c7_i32 = arith.constant 7 : i32
    %141 = vector.broadcast %c7_i32 : i32 to vector<16x64xi32>
    %142 = arith.cmpi eq, %135, %141 : vector<16x64xi32>
    %c2_55 = arith.constant 2 : index
    %c0_56 = arith.constant 0 : index
    %143 = vector.load %arg7[%c2_55, %c0_56] : memref<18x64xf32, #tpu.memory_space<vmem>>, vector<16x64xf32>
    %cst_57 = arith.constant 0.000000e+00 : f32
    %144 = vector.broadcast %cst_57 : f32 to vector<16x64xf32>
    %145 = arith.select %142, %144, %143 : vector<16x64xi1>, vector<16x64xf32>
    %c0_58 = arith.constant 0 : index
    %c0_59 = arith.constant 0 : index
    %c0_60 = arith.constant 0 : index
    %146 = vector.load %arg4[%c0_58, %c0_59, %c0_60] : memref<3x64x64xf32, #tpu.memory_space<vmem>>, vector<1x64x64xf32>
    %147 = vector.shape_cast %146 : vector<1x64x64xf32> to vector<64x64xf32>
    %cst_61 = arith.constant dense<0.000000e+00> : vector<16x64xf32>
    %148 = tpu.matmul %140, %147, %cst_61 {dimension_numbers = #tpu.dot_dimension_numbers<[1], [0], [0], [1], [0, 0, 1, 1], [], []>} : vector<16x64xf32>, vector<64x64xf32>, vector<16x64xf32> -> vector<16x64xf32>
    %c1_62 = arith.constant 1 : index
    %c0_63 = arith.constant 0 : index
    %c0_64 = arith.constant 0 : index
    %149 = vector.load %arg4[%c1_62, %c0_63, %c0_64] : memref<3x64x64xf32, #tpu.memory_space<vmem>>, vector<1x64x64xf32>
    %150 = vector.shape_cast %149 : vector<1x64x64xf32> to vector<64x64xf32>
    %cst_65 = arith.constant dense<0.000000e+00> : vector<16x64xf32>
    %151 = tpu.matmul %111, %150, %cst_65 {dimension_numbers = #tpu.dot_dimension_numbers<[1], [0], [0], [1], [0, 0, 1, 1], [], []>} : vector<16x64xf32>, vector<64x64xf32>, vector<16x64xf32> -> vector<16x64xf32>
    %152 = arith.addf %148, %151 : vector<16x64xf32>
    %c2_66 = arith.constant 2 : index
    %c0_67 = arith.constant 0 : index
    %c0_68 = arith.constant 0 : index
    %153 = vector.load %arg4[%c2_66, %c0_67, %c0_68] : memref<3x64x64xf32, #tpu.memory_space<vmem>>, vector<1x64x64xf32>
    %154 = vector.shape_cast %153 : vector<1x64x64xf32> to vector<64x64xf32>
    %cst_69 = arith.constant dense<0.000000e+00> : vector<16x64xf32>
    %155 = tpu.matmul %145, %154, %cst_69 {dimension_numbers = #tpu.dot_dimension_numbers<[1], [0], [0], [1], [0, 0, 1, 1], [], []>} : vector<16x64xf32>, vector<64x64xf32>, vector<16x64xf32> -> vector<16x64xf32>
    %156 = arith.addf %152, %155 : vector<16x64xf32>
    %157 = vector.extract_strided_slice %1 {offsets = [2, 0], sizes = [1, 64], strides = [1, 1]} : vector<3x64xf32> to vector<1x64xf32>
    %158 = vector.shape_cast %157 : vector<1x64xf32> to vector<64xf32>
    %159 = vector.shape_cast %158 : vector<64xf32> to vector<1x64xf32>
    %160 = vector.broadcast %159 : vector<1x64xf32> to vector<16x64xf32>
    %161 = arith.addf %156, %160 : vector<16x64xf32>
    %cst_70 = arith.constant 0.000000e+00 : f32
    %162 = vector.broadcast %cst_70 : f32 to vector<16x64xf32>
    %163 = arith.maximumf %161, %162 : vector<16x64xf32>
    %164 = arith.addf %163, %117 : vector<16x64xf32>
    %165 = vector.shape_cast %164 : vector<16x64xf32> to vector<2x8x64xf32>
    %c0_71 = arith.constant 0 : index
    %c0_72 = arith.constant 0 : index
    %c0_73 = arith.constant 0 : index
    %166 = vector.load %arg6[%c0_71, %c0_72, %c0_73] : memref<2x8x64xf32, #tpu.memory_space<vmem>>, vector<2x8x64xf32>
    tpu.vector_store %arg6[%c0_71, %c0_72, %c0_73], %165 {strides = array<i32>} : memref<2x8x64xf32, #tpu.memory_space<vmem>>, vector<2x8x64xf32>,
    return
  }
  func.func @transform_0(%arg0: i32) -> (i32, i32, i32, i32) {
    %c0_i32 = arith.constant 0 : i32
    %c0_i32_0 = arith.constant 0 : i32
    %c0_i32_1 = arith.constant 0 : i32
    %c0_i32_2 = arith.constant 0 : i32
    return %arg0, %c0_i32, %c0_i32_0, %c0_i32_1 : i32, i32, i32, i32
  }
  func.func @transform_1(%arg0: i32) -> (i32, i32, i32) {
    %c0_i32 = arith.constant 0 : i32
    %c0_i32_0 = arith.constant 0 : i32
    %c0_i32_1 = arith.constant 0 : i32
    %c0_i32_2 = arith.constant 0 : i32
    return %c0_i32, %c0_i32_0, %c0_i32_1 : i32, i32, i32
  }
  func.func @transform_2(%arg0: i32) -> (i32, i32) {
    %c0_i32 = arith.constant 0 : i32
    %c0_i32_0 = arith.constant 0 : i32
    %c0_i32_1 = arith.constant 0 : i32
    return %c0_i32, %c0_i32_0 : i32, i32
  }
  func.func @transform_3(%arg0: i32) -> (i32, i32, i32) {
    %c0_i32 = arith.constant 0 : i32
    %c0_i32_0 = arith.constant 0 : i32
    %c0_i32_1 = arith.constant 0 : i32
    %c0_i32_2 = arith.constant 0 : i32
    return %c0_i32, %c0_i32_0, %c0_i32_1 : i32, i32, i32
  }
  func.func @transform_4(%arg0: i32) -> (i32, i32) {
    %c0_i32 = arith.constant 0 : i32
    %c0_i32_0 = arith.constant 0 : i32
    %c0_i32_1 = arith.constant 0 : i32
    return %c0_i32, %c0_i32_0 : i32, i32
  }
  func.func @transform_5(%arg0: i32) -> (i32, i32, i32) {
    %c0_i32 = arith.constant 0 : i32
    %c0_i32_0 = arith.constant 0 : i32
    %c0_i32_1 = arith.constant 0 : i32
    return %arg0, %c0_i32, %c0_i32_0 : i32, i32, i32
  }
}

</mosaic_0001>

<llo_original>
// kernel: tile.31
$region0: #{tile.31}
  #allocation0 [shape = 's32[1]{0}', space=sflag, size = 0x4, scoped, tag = 'scoped memory for tile.31']
  %s0 = inlined_call_operand.vmem [shape: f32[8], index: 0, kind: input, shape index: {}]
  %s1 = inlined_call_operand.vmem [shape: f32[8,8], index: 1, kind: output, shape index: {}]
  // Predicated region
  $region2: #{tile.31} parent=0 // pred_check
    _
  $region3: #{tile.31} parent=0 // pred_check_branch
    %3 = sbr.rel (0) target = $region5
  $region4: #{tile.31} parent=0 // pred_region
    _
  $region5: #{tile.31} parent=0 // pred_fallthru
    _
  %v4 = vld [vmem:[%s0] ss:$0 sm:$0xff]
  %5 = vst [vmem:[%s1] sm:$0xff] %v4

// kernel: tile.34
$region0: #{tile.34}
  %s0 = inlined_call_operand.vmem [shape: f32[8,8], index: 0, kind: input, shape index: {}]
  %s1 = inlined_call_operand.vmem [shape: f32[1,64], index: 1, kind: output, shape index: {}]
  $region1: #{tile.34} parent=0
    #allocation0 [shape = 'u8[4096]{0}', space=vmem, size = 0x1000, scoped, tag = 'scoped mem for output reshape']
    %v2 = vld [vmem:[%s0] sm:$0x1]
    %vm3 = vcmask 64512
    %4 = vst.msk [vmem:[#allocation0] sm:$0x1] %vm3, %v2
    %s5 = scalar_lea.vmem %s0, 7
    %v6 = vld [vmem:[%s5] sm:$0x1]
    %7 = vrot.lane.b32.xlu0 %v6, 56
    %v8 = vpop.permute.xlu0 %7
    %vm9 = vcmask 523712
    %10 = vst.msk [vmem:[#allocation0] sm:$0x1] %vm9, %v8
    %s11 = scalar_lea.vmem %s0, 6
    %v12 = vld [vmem:[%s11] sm:$0x1]
    %13 = vrot.lane.b32.xlu0 %v12, 48
    %v14 = vpop.permute.xlu0 %13
    %vm15 = vcmask 458112
    %16 = vst.msk [vmem:[#allocation0] sm:$0x1] %vm15, %v14
    %s17 = scalar_lea.vmem %s0, 5
    %v18 = vld [vmem:[%s17] sm:$0x1]
    %19 = vrot.lane.b32.xlu0 %v18, 40
    %v20 = vpop.permute.xlu0 %19
    %vm21 = vcmask 392512
    %22 = vst.msk [vmem:[#allocation0] sm:$0x1] %vm21, %v20
    %s23 = scalar_lea.vmem %s0, 4
    %v24 = vld [vmem:[%s23] sm:$0x1]
    %25 = vrot.lane.b32.xlu0 %v24, 32
    %v26 = vpop.permute.xlu0 %25
    %vm27 = vcmask 326912
    %28 = vst.msk [vmem:[#allocation0] sm:$0x1] %vm27, %v26
    %s29 = scalar_lea.vmem %s0, 3
    %v30 = vld [vmem:[%s29] sm:$0x1]
    %31 = vrot.lane.b32.xlu0 %v30, 24
    %v32 = vpop.permute.xlu0 %31
    %vm33 = vcmask 261312
    %34 = vst.msk [vmem:[#allocation0] sm:$0x1] %vm33, %v32
    %s35 = scalar_lea.vmem %s0, 2
    %v36 = vld [vmem:[%s35] sm:$0x1]
    %37 = vrot.lane.b32.xlu0 %v36, 16
    %v38 = vpop.permute.xlu0 %37
    %vm39 = vcmask 195712
    %40 = vst.msk [vmem:[#allocation0] sm:$0x1] %vm39, %v38
    %s41 = scalar_lea.vmem %s0, 1
    %v42 = vld [vmem:[%s41] sm:$0x1]
    %43 = vrot.lane.b32.xlu0 %v42, 8
    %v44 = vpop.permute.xlu0 %43
    %vm45 = vcmask 130112
    %46 = vst.msk [vmem:[#allocation0] sm:$0x1] %vm45, %v44
    %s48 = sshll.u32 1, 1
    %s49 = ssub.s32 %s48, 1
    %v51 = vld [vmem:[#allocation0] sm:%s49]
    %s52 = sshll.u32 1, 1
    %s53 = ssub.s32 %s52, 1
    %54 = vst [vmem:[%s1] sm:%s53] %v51

// kernel: tile.39
$region0: #{tile.39}
  %s0 = inlined_call_operand.vmem [shape: f32[3,3,8,4], index: 0, kind: input, shape index: {}]
  %s1 = inlined_call_operand.vmem [shape: f32[3,3,32], index: 1, kind: output, shape index: {}]
  $region1: #{tile.39} parent=0
    #allocation0 [shape = 'u8[12288]{0}', space=vmem, size = 0x3000, scoped, tag = 'scoped mem for output reshape']
    %v2 = vld [vmem:[%s0] ss:$8 sm:$0xf]
    %v3 = vld [vmem:[%s0] ss:$8 sm:$0xf0]
    %vm4 = vcmask 1047556
    %v5 = vsel %vm4, %v3, %v2
    %vm6 = vcmask 31744
    %7 = vst.msk [vmem:[#allocation0] sm:$0x7] %vm6, %v5
    %s8 = scalar_lea.vmem [#allocation0], 5
    %9 = vst.msk [vmem:[%s8] sm:$0x38] %vm6, %v5
    %s10 = scalar_lea.vmem [#allocation0], 10
    %11 = vst.msk [vmem:[%s10] sm:$0xc0] %vm6, %v5
    %s12 = scalar_lea.vmem %s0, 64
    %v13 = vld [vmem:[%s12] sm:$0x1]
    %vm14 = vcmask 31744
    %s15 = scalar_lea.vmem [#allocation0], 18
    %16 = vst.msk [vmem:[%s15] sm:$0x1] %vm14, %v13
    %s17 = scalar_lea.vmem %s0, 7
    %v18 = vld [vmem:[%s17] ss:$8 sm:$0xf]
    %s19 = scalar_lea.vmem %s0, 7
    %v20 = vld [vmem:[%s19] ss:$8 sm:$0xf0]
    %vm21 = vcmask 1047556
    %v22 = vsel %vm21, %v20, %v18
    %23 = vrot.lane.b32.xlu0 %v22, 28
    %v24 = vpop.permute.xlu0 %23
    %vm25 = vcmask 261344
    %26 = vst.msk [vmem:[#allocation0] sm:$0x7] %vm25, %v24
    %s27 = scalar_lea.vmem [#allocation0], 5
    %28 = vst.msk [vmem:[%s27] sm:$0x38] %vm25, %v24
    %s29 = scalar_lea.vmem [#allocation0], 10
    %30 = vst.msk [vmem:[%s29] sm:$0xc0] %vm25, %v24
    %s31 = scalar_lea.vmem %s0, 71
    %v32 = vld [vmem:[%s31] sm:$0x1]
    %33 = vrot.lane.b32.xlu0 %v32, 28
    %v34 = vpop.permute.xlu0 %33
    %vm35 = vcmask 261344
    %s36 = scalar_lea.vmem [#allocation0], 18
    %37 = vst.msk [vmem:[%s36] sm:$0x1] %vm35, %v34
    %s38 = scalar_lea.vmem %s0, 6
    %v39 = vld [vmem:[%s38] ss:$8 sm:$0xf]
    %s40 = scalar_lea.vmem %s0, 6
    %v41 = vld [vmem:[%s40] ss:$8 sm:$0xf0]
    %vm42 = vcmask 1047556
    %v43 = vsel %vm42, %v41, %v39
    %44 = vrot.lane.b32.xlu0 %v43, 24
    %v45 = vpop.permute.xlu0 %44
    %vm46 = vcmask 228544
    %47 = vst.msk [vmem:[#allocation0] sm:$0x7] %vm46, %v45
    %s48 = scalar_lea.vmem [#allocation0], 5
    %49 = vst.msk [vmem:[%s48] sm:$0x38] %vm46, %v45
    %s50 = scalar_lea.vmem [#allocation0], 10
    %51 = vst.msk [vmem:[%s50] sm:$0xc0] %vm46, %v45
    %s52 = scalar_lea.vmem %s0, 70
    %v53 = vld [vmem:[%s52] sm:$0x1]
    %54 = vrot.lane.b32.xlu0 %v53, 24
    %v55 = vpop.permute.xlu0 %54
    %vm56 = vcmask 228544
    %s57 = scalar_lea.vmem [#allocation0], 18
    %58 = vst.msk [vmem:[%s57] sm:$0x1] %vm56, %v55
    %s59 = scalar_lea.vmem %s0, 5
    %v60 = vld [vmem:[%s59] ss:$8 sm:$0xf]
    %s61 = scalar_lea.vmem %s0, 5
    %v62 = vld [vmem:[%s61] ss:$8 sm:$0xf0]
    %vm63 = vcmask 1047556
    %v64 = vsel %vm63, %v62, %v60
    %65 = vrot.lane.b32.xlu0 %v64, 20
    %v66 = vpop.permute.xlu0 %65
    %vm67 = vcmask 195744
    %68 = vst.msk [vmem:[#allocation0] sm:$0x7] %vm67, %v66
    %s69 = scalar_lea.vmem [#allocation0], 5
    %70 = vst.msk [vmem:[%s69] sm:$0x38] %vm67, %v66
    %s71 = scalar_lea.vmem [#allocation0], 10
    %72 = vst.msk [vmem:[%s71] sm:$0xc0] %vm67, %v66
    %s73 = scalar_lea.vmem %s0, 69
    %v74 = vld [vmem:[%s73] sm:$0x1]
    %75 = vrot.lane.b32.xlu0 %v74, 20
    %v76 = vpop.permute.xlu0 %75
    %vm77 = vcmask 195744
    %s78 = scalar_lea.vmem [#allocation0], 18
    %79 = vst.msk [vmem:[%s78] sm:$0x1] %vm77, %v76
    %s80 = scalar_lea.vmem %s0, 4
    %v81 = vld [vmem:[%s80] ss:$8 sm:$0xf]
    %s82 = scalar_lea.vmem %s0, 4
    %v83 = vld [vmem:[%s82] ss:$8 sm:$0xf0]
    %vm84 = vcmask 1047556
    %v85 = vsel %vm84, %v83, %v81
    %86 = vrot.lane.b32.xlu0 %v85, 16
    %v87 = vpop.permute.xlu0 %86
    %vm88 = vcmask 162944
    %89 = vst.msk [vmem:[#allocation0] sm:$0x7] %vm88, %v87
    %s90 = scalar_lea.vmem [#allocation0], 5
    %91 = vst.msk [vmem:[%s90] sm:$0x38] %vm88, %v87
    %s92 = scalar_lea.vmem [#allocation0], 10
    %93 = vst.msk [vmem:[%s92] sm:$0xc0] %vm88, %v87
    %s94 = scalar_lea.vmem %s0, 68
    %v95 = vld [vmem:[%s94] sm:$0x1]
    %96 = vrot.lane.b32.xlu0 %v95, 16
    %v97 = vpop.permute.xlu0 %96
    %vm98 = vcmask 162944
    %s99 = scalar_lea.vmem [#allocation0], 18
    %100 = vst.msk [vmem:[%s99] sm:$0x1] %vm98, %v97
    %s101 = scalar_lea.vmem %s0, 3
    %v102 = vld [vmem:[%s101] ss:$8 sm:$0xf]
    %s103 = scalar_lea.vmem %s0, 3
    %v104 = vld [vmem:[%s103] ss:$8 sm:$0xf0]
    %vm105 = vcmask 1047556
    %v106 = vsel %vm105, %v104, %v102
    %107 = vrot.lane.b32.xlu0 %v106, 12
    %v108 = vpop.permute.xlu0 %107
    %vm109 = vcmask 130144
    %110 = vst.msk [vmem:[#allocation0] sm:$0x7] %vm109, %v108
    %s111 = scalar_lea.vmem [#allocation0], 5
    %112 = vst.msk [vmem:[%s111] sm:$0x38] %vm109, %v108
    %s113 = scalar_lea.vmem [#allocation0], 10
    %114 = vst.msk [vmem:[%s113] sm:$0xc0] %vm109, %v108
    %s115 = scalar_lea.vmem %s0, 67
    %v116 = vld [vmem:[%s115] sm:$0x1]
    %117 = vrot.lane.b32.xlu0 %v116, 12
    %v118 = vpop.permute.xlu0 %117
    %vm119 = vcmask 130144
    %s120 = scalar_lea.vmem [#allocation0], 18
    %121 = vst.msk [vmem:[%s120] sm:$0x1] %vm119, %v118
    %s122 = scalar_lea.vmem %s0, 2
    %v123 = vld [vmem:[%s122] ss:$8 sm:$0xf]
    %s124 = scalar_lea.vmem %s0, 2
    %v125 = vld [vmem:[%s124] ss:$8 sm:$0xf0]
    %vm126 = vcmask 1047556
    %v127 = vsel %vm126, %v125, %v123
    %128 = vrot.lane.b32.xlu0 %v127, 8
    %v129 = vpop.permute.xlu0 %128
    %vm130 = vcmask 97344
    %131 = vst.msk [vmem:[#allocation0] sm:$0x7] %vm130, %v129
    %s132 = scalar_lea.vmem [#allocation0], 5
    %133 = vst.msk [vmem:[%s132] sm:$0x38] %vm130, %v129
    %s134 = scalar_lea.vmem [#allocation0], 10
    %135 = vst.msk [vmem:[%s134] sm:$0xc0] %vm130, %v129
    %s136 = scalar_lea.vmem %s0, 66
    %v137 = vld [vmem:[%s136] sm:$0x1]
    %138 = vrot.lane.b32.xlu0 %v137, 8
    %v139 = vpop.permute.xlu0 %138
    %vm140 = vcmask 97344
    %s141 = scalar_lea.vmem [#allocation0], 18
    %142 = vst.msk [vmem:[%s141] sm:$0x1] %vm140, %v139
    %s143 = scalar_lea.vmem %s0, 1
    %v144 = vld [vmem:[%s143] ss:$8 sm:$0xf]
    %s145 = scalar_lea.vmem %s0, 1
    %v146 = vld [vmem:[%s145] ss:$8 sm:$0xf0]
    %vm147 = vcmask 1047556
    %v148 = vsel %vm147, %v146, %v144
    %149 = vrot.lane.b32.xlu0 %v148, 4
    %v150 = vpop.permute.xlu0 %149
    %vm151 = vcmask 64544
    %152 = vst.msk [vmem:[#allocation0] sm:$0x7] %vm151, %v150
    %s153 = scalar_lea.vmem [#allocation0], 5
    %154 = vst.msk [vmem:[%s153] sm:$0x38] %vm151, %v150
    %s155 = scalar_lea.vmem [#allocation0], 10
    %156 = vst.msk [vmem:[%s155] sm:$0xc0] %vm151, %v150
    %s157 = scalar_lea.vmem %s0, 65
    %v158 = vld [vmem:[%s157] sm:$0x1]
    %159 = vrot.lane.b32.xlu0 %v158, 4
    %v160 = vpop.permute.xlu0 %159
    %vm161 = vcmask 64544
    %s162 = scalar_lea.vmem [#allocation0], 18
    %163 = vst.msk [vmem:[%s162] sm:$0x1] %vm161, %v160
    %s165 = sshll.u32 1, 4
    %s166 = ssub.s32 %s165, 1
    %v168 = vld [vmem:[#allocation0] sm:%s166]
    %s169 = sshll.u32 1, 4
    %s170 = ssub.s32 %s169, 1
    %171 = vst [vmem:[%s1] sm:%s170] %v168
    %s172 = scalar_lea.vmem [#allocation0], 8
    %v173 = vld [vmem:[%s172] sm:%s166]
    %s174 = sshll.u32 1, 4
    %s175 = ssub.s32 %s174, 1
    %s176 = scalar_lea.vmem %s1, 4
    %177 = vst [vmem:[%s176] sm:%s175] %v173
    %s178 = scalar_lea.vmem [#allocation0], 16
    %v179 = vld [vmem:[%s178] sm:%s166]
    %s180 = sshll.u32 1, 4
    %s181 = ssub.s32 %s180, 1
    %s182 = smul.addr 4, 2
    %s183 = scalar_lea.vmem %s1, %s182
    %184 = vst [vmem:[%s183] sm:%s181] %v179

// kernel: cnn_block123.1
$region0: #{cnn_block123.1}
  #allocation0 [shape = 'u32[]', space=smem, size = 0x4, offset = 0x4, fixed_abs, tag = 'smem constant byte address 0x4 - core index']
  #allocation1 [shape = 'u32[144,128]{1,0:T(1,128)}', space=vmem, size = 0x12000, scoped, tag = 'internal scratch']
  #allocation2 [shape = 'f32[18,64]{1,0:T(8,128)}', space=vmem, size = 0x3000, scoped, tag = 'scratch operand']
  %s0 = inlined_call_operand.vmem [shape: f32[2,4,9,36], index: 0, kind: input, shape index: {}]
  %s1 = inlined_call_operand.vmem [shape: f32[3,3,32], index: 1, kind: input, shape index: {}]
  %s2 = inlined_call_operand.vmem [shape: f32[32,128], index: 2, kind: input, shape index: {}]
  %s3 = inlined_call_operand.vmem [shape: f32[3,64,64], index: 3, kind: input, shape index: {}]
  %s4 = inlined_call_operand.vmem [shape: f32[3,64], index: 4, kind: input, shape index: {}]
  %s5 = inlined_call_operand.vmem [shape: f32[2,8,64], index: 5, kind: output, shape index: {}]
  %s6 = sld [smem:[#allocation0]]
  $region30: #{cnn_block123.1} parent=0
    _
  %s8 = ssub.s32 1, %s6
  %s9 = scalar_select 0, %s8, %s6
  // Predicated region
  $region2: #{cnn_block123.1} parent=0 // pred_check
    _
  $region3: #{cnn_block123.1} parent=0 // pred_check_branch
    %11 = sbr.rel (0) target = $region5
  $region4: #{cnn_block123.1} parent=0 // pred_region
    _
  $region5: #{cnn_block123.1} parent=0 // pred_fallthru
    _
  // Predicated region
  $region6: #{cnn_block123.1} parent=0 // pred_check
    _
  $region7: #{cnn_block123.1} parent=0 // pred_check_branch
    %13 = sbr.rel (0) target = $region9
  $region8: #{cnn_block123.1} parent=0 // pred_region
    _
  $region9: #{cnn_block123.1} parent=0 // pred_fallthru
    _
  // Predicated region
  $region10: #{cnn_block123.1} parent=0 // pred_check
    _
  $region11: #{cnn_block123.1} parent=0 // pred_check_branch
    %15 = sbr.rel (0) target = $region13
  $region12: #{cnn_block123.1} parent=0 // pred_region
    _
  $region13: #{cnn_block123.1} parent=0 // pred_fallthru
    _
  // Predicated region
  $region14: #{cnn_block123.1} parent=0 // pred_check
    _
  $region15: #{cnn_block123.1} parent=0 // pred_check_branch
    %17 = sbr.rel (0) target = $region17
  $region16: #{cnn_block123.1} parent=0 // pred_region
    _
  $region17: #{cnn_block123.1} parent=0 // pred_fallthru
    _
  // Predicated region
  $region18: #{cnn_block123.1} parent=0 // pred_check
    _
  $region19: #{cnn_block123.1} parent=0 // pred_check_branch
    %19 = sbr.rel (0) target = $region21
  $region20: #{cnn_block123.1} parent=0 // pred_region
    _
  $region21: #{cnn_block123.1} parent=0 // pred_fallthru
    _
  %v20 = vld [vmem:[%s1] sm:$0x7]
  %v21 = vld [vmem:[%s1 + $0x4] sm:$0x7]
  %v22 = vld [vmem:[%s1 + $0x8] sm:$0x7]
  %v23 = vld [vmem:[%s4] sm:$0x7]
  %v24 = vlaneseq
  %v25 = vshrl.u32 %v24, 7
  %vm26 = vcmp.eq.s32.totalorder %v25, 0
  %v27 = vlaneseq
  %v28 = vand.u32 %v27, 127
  %vm29 = vcmp.lt.s32.totalorder %v28, 4
  %v30 = vld [vmem:[%s0] sm:$0xff]
  %v31 = vld [vmem:[%s0 + $0x40] sm:$0xff]
  %v32 = vlaneseq
  %v33 = vshrl.u32 %v32, 7
  %v34 = vsub.s32 0, %v33
  %v35 = vrot.slane %v20, %v34
  %v36 = vmul.f32 %v30, %v35
  %v37 = vmul.f32 %v31, %v35
  %v38 = vsel %vm26, -3.4028235e+38, %v30
  %v39 = vsel %vm26, -3.4028235e+38, %v31
  %v40 = vsel %vm29, -3.4028235e+38, %v38
  %v41 = vsel %vm29, -3.4028235e+38, %v39
  %s42 = scalar_lea.vmem %s0, 16
  %v43 = vld [vmem:[%s42] sm:$0xff]
  %v44 = vld [vmem:[%s42 + $0x40] sm:$0xff]
  %v45 = vlaneseq
  %v46 = vshrl.u32 %v45, 7
  %v47 = vsub.s32 1, %v46
  %v48 = vrot.slane %v20, %v47
  %v49 = vmul.f32 %v43, %v48
  %v50 = vmul.f32 %v44, %v48
  %v51 = vadd.f32 %v36, %v49
  %v52 = vadd.f32 %v37, %v50
  %v53 = vsel %vm26, -3.4028235e+38, %v43
  %v54 = vsel %vm26, -3.4028235e+38, %v44
  %v55 = vmax.f32 %v40, %v53
  %v56 = vmax.f32 %v41, %v54
  %v57 = vlaneseq
  %v58 = vshrl.u32 %v57, 7
  %v59 = vsub.s32 2, %v58
  %v60 = vrot.slane %v20, %v59
  %62 = vrot.lane.b32.xlu0 %v60, 4
  %v63 = vpop.permute.xlu0 %62
  %v65 = vmul.f32 %v30, %v63
  %v66 = vmul.f32 %v31, %v63
  %69 = vrot.lane.b32.xlu0 %v65, 124
  %v70 = vpop.permute.xlu0 %69
  %71 = vrot.lane.b32.xlu0 %v66, 124
  %v72 = vpop.permute.xlu0 %71
  %v75 = vadd.f32 %v51, %v70
  %v76 = vadd.f32 %v52, %v72
  %79 = vrot.lane.b32.xlu0 %v38, 124
  %v80 = vpop.permute.xlu0 %79
  %81 = vrot.lane.b32.xlu0 %v39, 124
  %v82 = vpop.permute.xlu0 %81
  %v85 = vmax.f32 %v55, %v80
  %v86 = vmax.f32 %v56, %v82
  %s87 = scalar_lea.vmem %s0, 32
  %v88 = vld [vmem:[%s87] sm:$0xff]
  %v89 = vld [vmem:[%s87 + $0x40] sm:$0xff]
  %v90 = vlaneseq
  %v91 = vshrl.u32 %v90, 7
  %v92 = vsub.s32 0, %v91
  %v93 = vrot.slane %v21, %v92
  %v94 = vmul.f32 %v88, %v93
  %v95 = vmul.f32 %v89, %v93
  %v96 = vadd.f32 %v75, %v94
  %v97 = vadd.f32 %v76, %v95
  %v98 = vsel %vm29, -3.4028235e+38, %v88
  %v99 = vsel %vm29, -3.4028235e+38, %v89
  %v100 = vmax.f32 %v85, %v98
  %v101 = vmax.f32 %v86, %v99
  %s102 = scalar_lea.vmem %s0, 48
  %v103 = vld [vmem:[%s102] sm:$0xff]
  %v104 = vld [vmem:[%s102 + $0x40] sm:$0xff]
  %v105 = vlaneseq
  %v106 = vshrl.u32 %v105, 7
  %v107 = vsub.s32 1, %v106
  %v108 = vrot.slane %v21, %v107
  %v109 = vmul.f32 %v103, %v108
  %v110 = vmul.f32 %v104, %v108
  %v111 = vadd.f32 %v96, %v109
  %v112 = vadd.f32 %v97, %v110
  %v113 = vmax.f32 %v100, %v103
  %v114 = vmax.f32 %v101, %v104
  %v115 = vlaneseq
  %v116 = vshrl.u32 %v115, 7
  %v117 = vsub.s32 2, %v116
  %v118 = vrot.slane %v21, %v117
  %120 = vrot.lane.b32.xlu0 %v118, 4
  %v121 = vpop.permute.xlu0 %120
  %v123 = vmul.f32 %v88, %v121
  %v124 = vmul.f32 %v89, %v121
  %127 = vrot.lane.b32.xlu0 %v123, 124
  %v128 = vpop.permute.xlu0 %127
  %129 = vrot.lane.b32.xlu0 %v124, 124
  %v130 = vpop.permute.xlu0 %129
  %v133 = vadd.f32 %v111, %v128
  %v134 = vadd.f32 %v112, %v130
  %137 = vrot.lane.b32.xlu0 %v88, 124
  %v138 = vpop.permute.xlu0 %137
  %139 = vrot.lane.b32.xlu0 %v89, 124
  %v140 = vpop.permute.xlu0 %139
  %v143 = vmax.f32 %v113, %v138
  %v144 = vmax.f32 %v114, %v140
  %v145 = vld [vmem:[%s0 + $0x1] sm:$0xff]
  %v146 = vld [vmem:[%s0 + $0x41] sm:$0xff]
  %v147 = vlaneseq
  %v148 = vshrl.u32 %v147, 7
  %v149 = vsub.s32 0, %v148
  %v150 = vrot.slane %v22, %v149
  %v151 = vmul.f32 %v145, %v150
  %v152 = vmul.f32 %v146, %v150
  %v153 = vadd.f32 %v133, %v151
  %v154 = vadd.f32 %v134, %v152
  %v155 = vsel %vm29, -3.4028235e+38, %v145
  %v156 = vsel %vm29, -3.4028235e+38, %v146
  %v157 = vmax.f32 %v143, %v155
  %v158 = vmax.f32 %v144, %v156
  %v159 = vld [vmem:[%s42 + $0x1] sm:$0xff]
  %v160 = vld [vmem:[%s42 + $0x41] sm:$0xff]
  %v161 = vlaneseq
  %v162 = vshrl.u32 %v161, 7
  %v163 = vsub.s32 1, %v162
  %v164 = vrot.slane %v22, %v163
  %v165 = vmul.f32 %v159, %v164
  %v166 = vmul.f32 %v160, %v164
  %v167 = vadd.f32 %v153, %v165
  %v168 = vadd.f32 %v154, %v166
  %v169 = vmax.f32 %v157, %v159
  %v170 = vmax.f32 %v158, %v160
  %v171 = vlaneseq
  %v172 = vshrl.u32 %v171, 7
  %v173 = vsub.s32 2, %v172
  %v174 = vrot.slane %v22, %v173
  %176 = vrot.lane.b32.xlu0 %v174, 4
  %v177 = vpop.permute.xlu0 %176
  %v179 = vmul.f32 %v145, %v177
  %v180 = vmul.f32 %v146, %v177
  %183 = vrot.lane.b32.xlu0 %v179, 124
  %v184 = vpop.permute.xlu0 %183
  %185 = vrot.lane.b32.xlu0 %v180, 124
  %v186 = vpop.permute.xlu0 %185
  %v189 = vadd.f32 %v167, %v184
  %v190 = vadd.f32 %v168, %v186
  %193 = vrot.lane.b32.xlu0 %v145, 124
  %v194 = vpop.permute.xlu0 %193
  %195 = vrot.lane.b32.xlu0 %v146, 124
  %v196 = vpop.permute.xlu0 %195
  %v199 = vmax.f32 %v169, %v194
  %v200 = vmax.f32 %v170, %v196
  %v201 = vld [vmem:[%s2] sm:$0xff]
  %v202 = vld [vmem:[%s2 + $0x8] sm:$0xff]
  %v203 = vld [vmem:[%s2 + $0x10] sm:$0xff]
  %v204 = vld [vmem:[%s2 + $0x18] sm:$0xff]
  %vm205 = vcmask 261120
  %v207 = vsel %vm205, %v189, 0
  %v210 = vsel %vm205, %v190, 0
  %v213 = vsel %vm205, %v199, 0
  %v216 = vsel %vm205, %v200, 0
  %218 = vmatprep.subr.mxu0 0.0
  %219 = vmatpush1.msra.mxu0 0.0
  %220 = vmatprep.subr.mxu0 0.0
  %221 = vmatpush1.msra.mxu0 0.0
  %222 = vmatprep.subr.mxu0 0.0
  %223 = vmatpush1.msra.mxu0 0.0
  %224 = vmatprep.subr.mxu0 0.0
  %225 = vmatpush1.msra.mxu0 0.0
  %226 = vmatprep.subr.mxu0 0.0
  %227 = vmatpush1.msra.mxu0 0.0
  %228 = vmatprep.subr.mxu0 0.0
  %229 = vmatpush1.msra.mxu0 0.0
  %230 = vmatprep.subr.mxu0 0.0
  %231 = vmatpush1.msra.mxu0 0.0
  %232 = vmatprep.subr.mxu0 0.0
  %233 = vmatpush1.msra.mxu0 0.0
  %234 = vmatprep.subr.mxu0 0.0
  %235 = vmatpush1.msra.mxu0 0.0
  %236 = vmatprep.subr.mxu0 0.0
  %237 = vmatpush1.msra.mxu0 0.0
  %238 = vmatprep.subr.mxu0 0.0
  %239 = vmatpush1.msra.mxu0 0.0
  %240 = vmatprep.subr.mxu0 0.0
  %241 = vmatpush1.msra.mxu0 0.0
  %242 = vmatprep.subr.mxu0 0.0
  %243 = vmatpush1.msra.mxu0 %v204
  %244 = vmatprep.subr.mxu0 0.0
  %245 = vmatpush1.msra.mxu0 %v203
  %246 = vmatprep.subr.mxu0 0.0
  %247 = vmatpush1.msra.mxu0 %v202
  %248 = vmatprep.subr.mxu0 0.0
  %249 = vmatpush1.msra.mxu0 %v201
  %250 = vmatprep.subr.mxu0 0.0
  %251 = vmatpush2.msra.mxu0 0.0
  %252 = vmatprep.subr.mxu0 0.0
  %253 = vmatpush2.msra.mxu0 0.0
  %254 = vmatprep.subr.mxu0 0.0
  %255 = vmatpush2.msra.mxu0 0.0
  %256 = vmatprep.subr.mxu0 0.0
  %257 = vmatpush2.msra.mxu0 0.0
  %258 = vmatprep.subr.mxu0 0.0
  %259 = vmatpush2.msra.mxu0 0.0
  %260 = vmatprep.subr.mxu0 0.0
  %261 = vmatpush2.msra.mxu0 0.0
  %262 = vmatprep.subr.mxu0 0.0
  %263 = vmatpush2.msra.mxu0 0.0
  %264 = vmatprep.subr.mxu0 0.0
  %265 = vmatpush2.msra.mxu0 0.0
  %266 = vmatprep.subr.mxu0 0.0
  %267 = vmatpush2.msra.mxu0 0.0
  %268 = vmatprep.subr.mxu0 0.0
  %269 = vmatpush2.msra.mxu0 0.0
  %270 = vmatprep.subr.mxu0 0.0
  %271 = vmatpush2.msra.mxu0 0.0
  %272 = vmatprep.subr.mxu0 0.0
  %273 = vmatpush2.msra.mxu0 0.0
  %274 = vmatprep.subr.mxu0 0.0
  %275 = vmatpush2.msra.mxu0 0.0
  %276 = vmatprep.subr.mxu0 0.0
  %277 = vmatpush2.msra.mxu0 0.0
  %278 = vmatprep.subr.mxu0 0.0
  %279 = vmatpush2.msra.mxu0 0.0
  %280 = vmatprep.subr.mxu0 0.0
  %281 = vmatpush2.msra.mxu0 0.0
  %282 = vmatprep.mubr.f32.mxu0 0.0
  %283 = vmatmul.mubr.f32.gmra.mxu0 %v207
  %v284 = vpop.f32.mrf.mxu0
  %v285 = vadd.f32 0.0, %v284
  %v286 = vpop.f32.mrf.mxu0
  %287 = vmatprep.mubr.f32.mxu0 0.0
  %288 = vmatmul.mubr.f32.gmra.mxu0 %v210
  %v289 = vpop.f32.mrf.mxu0
  %v290 = vadd.f32 0.0, %v289
  %v291 = vpop.f32.mrf.mxu0
  %292 = vmatprep.mubr.f32.mxu0 0.0
  %293 = vmatmul.mubr.f32.gmra.mxu0 %v213
  %v294 = vpop.f32.mrf.mxu0
  %v295 = vadd.f32 0.0, %v294
  %v296 = vpop.f32.mrf.mxu0
  %297 = vmatprep.mubr.f32.mxu0 0.0
  %298 = vmatmul.mubr.f32.gmra.mxu0 %v216
  %v299 = vpop.f32.mrf.mxu0
  %v300 = vadd.f32 0.0, %v299
  %v301 = vpop.f32.mrf.mxu0
  %302 = vdwg.mxu0
  %v303 = vlaneseq
  %v304 = vshrl.u32 %v303, 7
  %v305 = vsub.s32 0, %v304
  %v306 = vrot.slane %v23, %v305
  %v307 = vadd.f32 %v285, %v306
  %v308 = vadd.f32 %v290, %v306
  %v309 = vmax.f32 %v307, 0.0
  %v310 = vmax.f32 %v308, 0.0
  %v311 = vlaneseq
  %v312 = vshrl.u32 %v311, 7
  %v313 = vsub.s32 1, %v312
  %v314 = vrot.slane %v23, %v313
  %316 = vrot.lane.b32.xlu0 %v314, 64
  %v317 = vpop.permute.xlu0 %316
  %v319 = vadd.f32 %v295, %v317
  %v320 = vadd.f32 %v300, %v317
  %vm321 = vcmask 523264
  %322 = vst.msk [vmem:[#allocation2 + $0x1] sm:$0xff] %vm321, %v309
  %323 = vst.msk [vmem:[#allocation2 + $0x9] sm:$0xff] %vm321, %v310
  %v324 = vadd.s32 %v25, 8
  %vm325 = vcmp.lt.s32.totalorder %v25, 0
  %v326 = vsub.s32 0, %v25
  %v327 = vsel %vm325, %v326, %v25
  %v328 = vshrl.u32 %v327, 3
  %v329 = vand.u32 %v327, 7
  %v330 = vsub.s32 0, %v329
  %v331 = vsel %vm325, %v330, %v329
  %vm332 = vcmp.lt.s32.totalorder %v324, 0
  %v333 = vsub.s32 0, %v324
  %v334 = vsel %vm332, %v333, %v324
  %v335 = vshrl.u32 %v334, 3
  %v336 = vand.u32 %v334, 7
  %v337 = vsub.s32 0, %v336
  %v338 = vsel %vm332, %v337, %v336
  %vm339 = vcmp.ne.s32.totalorder %v331, 0
  %vm340 = vcmp.ne.s32.totalorder %v338, 0
  %vm341 = vcmp.lt.s32.totalorder %v331, 0
  %vm342 = vcmp.lt.s32.totalorder %v338, 0
  %vm343 = vmand %vm341, %vm339
  %vm344 = vmand %vm342, %vm340
  %v345 = vadd.s32 %v331, 8
  %v346 = vadd.s32 %v338, 8
  %v347 = vsel %vm343, %v345, %v331
  %v348 = vsel %vm344, %v346, %v338
  %vm349 = vcmp.eq.s32.totalorder %v347, 0
  %vm350 = vcmp.eq.s32.totalorder %v348, 0
  %v351 = vld [vmem:[#allocation2] sm:$0xff]
  %v352 = vld [vmem:[#allocation2 + $0x8] sm:$0xff]
  %v353 = vsel %vm349, 0.0, %v351
  %v354 = vsel %vm350, 0.0, %v352
  %vm355 = vcmp.eq.s32.totalorder %v347, 7
  %vm356 = vcmp.eq.s32.totalorder %v348, 7
  %v357 = vld [vmem:[#allocation2 + $0x2] sm:$0xff]
  %v358 = vld [vmem:[#allocation2 + $0xa] sm:$0xff]
  %v359 = vsel %vm355, 0.0, %v357
  %v360 = vsel %vm356, 0.0, %v358
  %v361 = vld [vmem:[%s3] sm:$0xff]
  %v362 = vld [vmem:[%s3 + $0x8] sm:$0xff]
  %v363 = vld [vmem:[%s3 + $0x10] sm:$0xff]
  %v364 = vld [vmem:[%s3 + $0x18] sm:$0xff]
  %v365 = vld [vmem:[%s3 + $0x20] sm:$0xff]
  %v366 = vld [vmem:[%s3 + $0x28] sm:$0xff]
  %v367 = vld [vmem:[%s3 + $0x30] sm:$0xff]
  %v368 = vld [vmem:[%s3 + $0x38] sm:$0xff]
  %s369 = scalar_lea.vmem %s3, 64
  %v370 = vld [vmem:[%s369] sm:$0xff]
  %v371 = vld [vmem:[%s369 + $0x8] sm:$0xff]
  %v372 = vld [vmem:[%s369 + $0x10] sm:$0xff]
  %v373 = vld [vmem:[%s369 + $0x18] sm:$0xff]
  %v374 = vld [vmem:[%s369 + $0x20] sm:$0xff]
  %v375 = vld [vmem:[%s369 + $0x28] sm:$0xff]
  %v376 = vld [vmem:[%s369 + $0x30] sm:$0xff]
  %v377 = vld [vmem:[%s369 + $0x38] sm:$0xff]
  %v379 = vsel %vm321, %v309, 0
  %v382 = vsel %vm321, %v310, 0
  %384 = vmatprep.subr.mxu0 0.0
  %385 = vmatpush1.msra.mxu0 0.0
  %386 = vmatprep.subr.mxu0 0.0
  %387 = vmatpush1.msra.mxu0 0.0
  %388 = vmatprep.subr.mxu0 0.0
  %389 = vmatpush1.msra.mxu0 0.0
  %390 = vmatprep.subr.mxu0 0.0
  %391 = vmatpush1.msra.mxu0 0.0
  %392 = vmatprep.subr.mxu0 0.0
  %393 = vmatpush1.msra.mxu0 0.0
  %394 = vmatprep.subr.mxu0 0.0
  %395 = vmatpush1.msra.mxu0 0.0
  %396 = vmatprep.subr.mxu0 0.0
  %397 = vmatpush1.msra.mxu0 0.0
  %398 = vmatprep.subr.mxu0 0.0
  %399 = vmatpush1.msra.mxu0 0.0
  %400 = vmatprep.subr.mxu0 0.0
  %401 = vmatpush1.msra.mxu0 %v377
  %402 = vmatprep.subr.mxu0 0.0
  %403 = vmatpush1.msra.mxu0 %v376
  %404 = vmatprep.subr.mxu0 0.0
  %405 = vmatpush1.msra.mxu0 %v375
  %406 = vmatprep.subr.mxu0 0.0
  %407 = vmatpush1.msra.mxu0 %v374
  %408 = vmatprep.subr.mxu0 0.0
  %409 = vmatpush1.msra.mxu0 %v373
  %410 = vmatprep.subr.mxu0 0.0
  %411 = vmatpush1.msra.mxu0 %v372
  %412 = vmatprep.subr.mxu0 0.0
  %413 = vmatpush1.msra.mxu0 %v371
  %414 = vmatprep.subr.mxu0 0.0
  %415 = vmatpush1.msra.mxu0 %v370
  %416 = vmatprep.subr.mxu0 0.0
  %417 = vmatpush2.msra.mxu0 0.0
  %418 = vmatprep.subr.mxu0 0.0
  %419 = vmatpush2.msra.mxu0 0.0
  %420 = vmatprep.subr.mxu0 0.0
  %421 = vmatpush2.msra.mxu0 0.0
  %422 = vmatprep.subr.mxu0 0.0
  %423 = vmatpush2.msra.mxu0 0.0
  %424 = vmatprep.subr.mxu0 0.0
  %425 = vmatpush2.msra.mxu0 0.0
  %426 = vmatprep.subr.mxu0 0.0
  %427 = vmatpush2.msra.mxu0 0.0
  %428 = vmatprep.subr.mxu0 0.0
  %429 = vmatpush2.msra.mxu0 0.0
  %430 = vmatprep.subr.mxu0 0.0
  %431 = vmatpush2.msra.mxu0 0.0
  %432 = vmatprep.subr.mxu0 0.0
  %433 = vmatpush2.msra.mxu0 0.0
  %434 = vmatprep.subr.mxu0 0.0
  %435 = vmatpush2.msra.mxu0 0.0
  %436 = vmatprep.subr.mxu0 0.0
  %437 = vmatpush2.msra.mxu0 0.0
  %438 = vmatprep.subr.mxu0 0.0
  %439 = vmatpush2.msra.mxu0 0.0
  %440 = vmatprep.subr.mxu0 0.0
  %441 = vmatpush2.msra.mxu0 0.0
  %442 = vmatprep.subr.mxu0 0.0
  %443 = vmatpush2.msra.mxu0 0.0
  %444 = vmatprep.subr.mxu0 0.0
  %445 = vmatpush2.msra.mxu0 0.0
  %446 = vmatprep.subr.mxu0 0.0
  %447 = vmatpush2.msra.mxu0 0.0
  %448 = vmatprep.mubr.f32.mxu0 0.0
  %449 = vmatmul.mubr.f32.gmra.mxu0 %v379
  %v450 = vpop.f32.mrf.mxu0
  %v451 = vadd.f32 0.0, %v450
  %v452 = vpop.f32.mrf.mxu0
  %453 = vmatprep.mubr.f32.mxu0 0.0
  %454 = vmatmul.mubr.f32.gmra.mxu0 %v382
  %v455 = vpop.f32.mrf.mxu0
  %v456 = vadd.f32 0.0, %v455
  %v457 = vpop.f32.mrf.mxu0
  %458 = vdwg.mxu0
  %v460 = vsel %vm321, %v353, 0
  %v463 = vsel %vm321, %v354, 0
  %465 = vmatprep.subr.mxu0 0.0
  %466 = vmatpush1.msra.mxu0 0.0
  %467 = vmatprep.subr.mxu0 0.0
  %468 = vmatpush1.msra.mxu0 0.0
  %469 = vmatprep.subr.mxu0 0.0
  %470 = vmatpush1.msra.mxu0 0.0
  %471 = vmatprep.subr.mxu0 0.0
  %472 = vmatpush1.msra.mxu0 0.0
  %473 = vmatprep.subr.mxu0 0.0
  %474 = vmatpush1.msra.mxu0 0.0
  %475 = vmatprep.subr.mxu0 0.0
  %476 = vmatpush1.msra.mxu0 0.0
  %477 = vmatprep.subr.mxu0 0.0
  %478 = vmatpush1.msra.mxu0 0.0
  %479 = vmatprep.subr.mxu0 0.0
  %480 = vmatpush1.msra.mxu0 0.0
  %481 = vmatprep.subr.mxu0 0.0
  %482 = vmatpush1.msra.mxu0 %v368
  %483 = vmatprep.subr.mxu0 0.0
  %484 = vmatpush1.msra.mxu0 %v367
  %485 = vmatprep.subr.mxu0 0.0
  %486 = vmatpush1.msra.mxu0 %v366
  %487 = vmatprep.subr.mxu0 0.0
  %488 = vmatpush1.msra.mxu0 %v365
  %489 = vmatprep.subr.mxu0 0.0
  %490 = vmatpush1.msra.mxu0 %v364
  %491 = vmatprep.subr.mxu0 0.0
  %492 = vmatpush1.msra.mxu0 %v363
  %493 = vmatprep.subr.mxu0 0.0
  %494 = vmatpush1.msra.mxu0 %v362
  %495 = vmatprep.subr.mxu0 0.0
  %496 = vmatpush1.msra.mxu0 %v361
  %497 = vmatprep.subr.mxu0 0.0
  %498 = vmatpush2.msra.mxu0 0.0
  %499 = vmatprep.subr.mxu0 0.0
  %500 = vmatpush2.msra.mxu0 0.0
  %501 = vmatprep.subr.mxu0 0.0
  %502 = vmatpush2.msra.mxu0 0.0
  %503 = vmatprep.subr.mxu0 0.0
  %504 = vmatpush2.msra.mxu0 0.0
  %505 = vmatprep.subr.mxu0 0.0
  %506 = vmatpush2.msra.mxu0 0.0
  %507 = vmatprep.subr.mxu0 0.0
  %508 = vmatpush2.msra.mxu0 0.0
  %509 = vmatprep.subr.mxu0 0.0
  %510 = vmatpush2.msra.mxu0 0.0
  %511 = vmatprep.subr.mxu0 0.0
  %512 = vmatpush2.msra.mxu0 0.0
  %513 = vmatprep.subr.mxu0 0.0
  %514 = vmatpush2.msra.mxu0 0.0
  %515 = vmatprep.subr.mxu0 0.0
  %516 = vmatpush2.msra.mxu0 0.0
  %517 = vmatprep.subr.mxu0 0.0
  %518 = vmatpush2.msra.mxu0 0.0
  %519 = vmatprep.subr.mxu0 0.0
  %520 = vmatpush2.msra.mxu0 0.0
  %521 = vmatprep.subr.mxu0 0.0
  %522 = vmatpush2.msra.mxu0 0.0
  %523 = vmatprep.subr.mxu0 0.0
  %524 = vmatpush2.msra.mxu0 0.0
  %525 = vmatprep.subr.mxu0 0.0
  %526 = vmatpush2.msra.mxu0 0.0
  %527 = vmatprep.subr.mxu0 0.0
  %528 = vmatpush2.msra.mxu0 0.0
  %529 = vmatprep.mubr.f32.mxu0 0.0
  %530 = vmatmul.mubr.f32.gmra.mxu0 %v460
  %v531 = vpop.f32.mrf.mxu0
  %v532 = vadd.f32 %v451, %v531
  %v533 = vpop.f32.mrf.mxu0
  %534 = vmatprep.mubr.f32.mxu0 0.0
  %535 = vmatmul.mubr.f32.gmra.mxu0 %v463
  %v536 = vpop.f32.mrf.mxu0
  %v537 = vadd.f32 %v456, %v536
  %v538 = vpop.f32.mrf.mxu0
  %539 = vdwg.mxu0
  %s540 = scalar_lea.vmem %s3, 128
  %v541 = vld [vmem:[%s540] sm:$0xff]
  %v542 = vld [vmem:[%s540 + $0x8] sm:$0xff]
  %v543 = vld [vmem:[%s540 + $0x10] sm:$0xff]
  %v544 = vld [vmem:[%s540 + $0x18] sm:$0xff]
  %v545 = vld [vmem:[%s540 + $0x20] sm:$0xff]
  %v546 = vld [vmem:[%s540 + $0x28] sm:$0xff]
  %v547 = vld [vmem:[%s540 + $0x30] sm:$0xff]
  %v548 = vld [vmem:[%s540 + $0x38] sm:$0xff]
  %v550 = vsel %vm321, %v359, 0
  %v553 = vsel %vm321, %v360, 0
  %555 = vmatprep.subr.mxu0 0.0
  %556 = vmatpush1.msra.mxu0 0.0
  %557 = vmatprep.subr.mxu0 0.0
  %558 = vmatpush1.msra.mxu0 0.0
  %559 = vmatprep.subr.mxu0 0.0
  %560 = vmatpush1.msra.mxu0 0.0
  %561 = vmatprep.subr.mxu0 0.0
  %562 = vmatpush1.msra.mxu0 0.0
  %563 = vmatprep.subr.mxu0 0.0
  %564 = vmatpush1.msra.mxu0 0.0
  %565 = vmatprep.subr.mxu0 0.0
  %566 = vmatpush1.msra.mxu0 0.0
  %567 = vmatprep.subr.mxu0 0.0
  %568 = vmatpush1.msra.mxu0 0.0
  %569 = vmatprep.subr.mxu0 0.0
  %570 = vmatpush1.msra.mxu0 0.0
  %571 = vmatprep.subr.mxu0 0.0
  %572 = vmatpush1.msra.mxu0 %v548
  %573 = vmatprep.subr.mxu0 0.0
  %574 = vmatpush1.msra.mxu0 %v547
  %575 = vmatprep.subr.mxu0 0.0
  %576 = vmatpush1.msra.mxu0 %v546
  %577 = vmatprep.subr.mxu0 0.0
  %578 = vmatpush1.msra.mxu0 %v545
  %579 = vmatprep.subr.mxu0 0.0
  %580 = vmatpush1.msra.mxu0 %v544
  %581 = vmatprep.subr.mxu0 0.0
  %582 = vmatpush1.msra.mxu0 %v543
  %583 = vmatprep.subr.mxu0 0.0
  %584 = vmatpush1.msra.mxu0 %v542
  %585 = vmatprep.subr.mxu0 0.0
  %586 = vmatpush1.msra.mxu0 %v541
  %587 = vmatprep.subr.mxu0 0.0
  %588 = vmatpush2.msra.mxu0 0.0
  %589 = vmatprep.subr.mxu0 0.0
  %590 = vmatpush2.msra.mxu0 0.0
  %591 = vmatprep.subr.mxu0 0.0
  %592 = vmatpush2.msra.mxu0 0.0
  %593 = vmatprep.subr.mxu0 0.0
  %594 = vmatpush2.msra.mxu0 0.0
  %595 = vmatprep.subr.mxu0 0.0
  %596 = vmatpush2.msra.mxu0 0.0
  %597 = vmatprep.subr.mxu0 0.0
  %598 = vmatpush2.msra.mxu0 0.0
  %599 = vmatprep.subr.mxu0 0.0
  %600 = vmatpush2.msra.mxu0 0.0
  %601 = vmatprep.subr.mxu0 0.0
  %602 = vmatpush2.msra.mxu0 0.0
  %603 = vmatprep.subr.mxu0 0.0
  %604 = vmatpush2.msra.mxu0 0.0
  %605 = vmatprep.subr.mxu0 0.0
  %606 = vmatpush2.msra.mxu0 0.0
  %607 = vmatprep.subr.mxu0 0.0
  %608 = vmatpush2.msra.mxu0 0.0
  %609 = vmatprep.subr.mxu0 0.0
  %610 = vmatpush2.msra.mxu0 0.0
  %611 = vmatprep.subr.mxu0 0.0
  %612 = vmatpush2.msra.mxu0 0.0
  %613 = vmatprep.subr.mxu0 0.0
  %614 = vmatpush2.msra.mxu0 0.0
  %615 = vmatprep.subr.mxu0 0.0
  %616 = vmatpush2.msra.mxu0 0.0
  %617 = vmatprep.subr.mxu0 0.0
  %618 = vmatpush2.msra.mxu0 0.0
  %619 = vmatprep.mubr.f32.mxu0 0.0
  %620 = vmatmul.mubr.f32.gmra.mxu0 %v550
  %v621 = vpop.f32.mrf.mxu0
  %v622 = vadd.f32 0.0, %v621
  %v623 = vpop.f32.mrf.mxu0
  %624 = vmatprep.mubr.f32.mxu0 0.0
  %625 = vmatmul.mubr.f32.gmra.mxu0 %v553
  %v626 = vpop.f32.mrf.mxu0
  %v627 = vadd.f32 0.0, %v626
  %v628 = vpop.f32.mrf.mxu0
  %629 = vdwg.mxu0
  %v630 = vadd.f32 %v532, %v622
  %v631 = vadd.f32 %v537, %v627
  %v632 = vlaneseq
  %v633 = vshrl.u32 %v632, 7
  %v634 = vsub.s32 2, %v633
  %v635 = vrot.slane %v23, %v634
  %v636 = vadd.f32 %v630, %v635
  %v637 = vadd.f32 %v631, %v635
  %v638 = vmax.f32 %v636, 0.0
  %v639 = vmax.f32 %v637, 0.0
  %642 = vrot.lane.b32.xlu0 %v319, 64
  %v643 = vpop.permute.xlu0 %642
  %644 = vrot.lane.b32.xlu0 %v320, 64
  %v645 = vpop.permute.xlu0 %644
  %v648 = vadd.f32 %v638, %v643
  %v649 = vadd.f32 %v639, %v645
  %650 = vst.msk [vmem:[%s5] sm:$0xff] %vm321, %v648
  %651 = vst.msk [vmem:[%s5 + $0x8] sm:$0xff] %vm321, %v649
  // Predicated region
  $region22: #{cnn_block123.1} parent=0 // pred_check
    _
  $region23: #{cnn_block123.1} parent=0 // pred_check_branch
    %653 = sbr.rel (0) target = $region25
  $region24: #{cnn_block123.1} parent=0 // pred_region
    _
  $region25: #{cnn_block123.1} parent=0 // pred_fallthru
    _
  // Predicated region
  $region26: #{cnn_block123.1} parent=0 // pred_check
    _
  $region27: #{cnn_block123.1} parent=0 // pred_check_branch
    %655 = sbr.rel (0) target = $region29
  $region28: #{cnn_block123.1} parent=0 // pred_region
    _
  $region29: #{cnn_block123.1} parent=0 // pred_fallthru
    _

</llo_original>
